<compile_context>
chip_gen: v5e
topology: v5e:2x2
jax: 0.10.0
libtpu: 0.0.40
codegen_flags: <defaults>
</compile_context>

<pallas_src>
import functools

import jax
import jax.numpy as jnp
import numpy as np
from jax.experimental import pallas as pl
from jax.experimental.pallas import tpu as pltpu

_LANE = 128
_SUBLANE = 8


def _round_up(x, m):
    return ((x + m - 1) // m) * m


# ---------------------------------------------------------------------------
# Kernel factory: all GraphWaveletLayers + both regressor heads, one batch tile.
# ---------------------------------------------------------------------------
def _make_kernel(num_layers, n_real_nodes):
    def kernel(x_ref, phi_ref, *rest):
        w_refs = rest[:num_layers]
        wh_ref = rest[num_layers]
        bh_ref = rest[num_layers + 1]
        out_ref = rest[num_layers + 2]

        NP, TB, _ = x_ref.shape            # padded nodes, batch tile, padded feat
        x = x_ref[...]                     # (NP, TB, FP0)

        for layer in range(num_layers):    # small static L -> unrolled at trace
            w = w_refs[layer][...]         # (FPi, FPo), zero padded
            fpi, fpo = w.shape

            # x @ W for the whole tile: one lane-dense (NP*TB, FPi)@(FPi, FPo).
            filtered = jnp.dot(x.reshape(NP * TB, fpi), w,
                               preferred_element_type=jnp.float32)
            # (NP*TB, FPo) -> (NP, TB*FPo): node-major wide matrix.
            filtered = filtered.reshape(NP, TB * fpo)

            if layer + 1 < num_layers:
                phi = phi_ref[layer]                              # (NP, NP)
                localized = jnp.dot(phi, filtered,
                                    preferred_element_type=jnp.float32)
                loc = jnp.where(localized >= 0.0, localized, 0.2 * localized)
                x = loc.reshape(NP, TB, fpo)
            else:
                # Only nodes N-2 (CO) and N-1 (CO2) feed the heads: slice phi
                # to its last two real rows -> 2 output rows instead of NP.
                phi_full = phi_ref[layer]                         # (NP, NP)
                phi2 = phi_full[n_real_nodes - 2:n_real_nodes, :] # (2, NP)
                localized = jnp.dot(phi2, filtered,
                                    preferred_element_type=jnp.float32)
                loc = jnp.where(localized >= 0.0, localized, 0.2 * localized)
                x = loc.reshape(2, TB, fpo)
            # TODO(synk): training-mode F.dropout (stochastic) omitted -> identity

        # Regressor heads (lane-padded outputs).
        out_ref[0] = (jnp.dot(x[0], wh_ref[0],
                              preferred_element_type=jnp.float32) + bh_ref[0])
        out_ref[1] = (jnp.dot(x[1], wh_ref[1],
                              preferred_element_type=jnp.float32) + bh_ref[1])

    return kernel


# ---------------------------------------------------------------------------
# Parameter initialization (deterministic, mirrors the PyTorch __init__).
# ---------------------------------------------------------------------------
def init_params(key, input_dim, hidden_dims, output_dim, wavelets_shape):
    nrow, _ = wavelets_shape
    params = {"layers": []}
    dims = [input_dim] + list(hidden_dims)
    keys = iter(jax.random.split(key, 2 * len(hidden_dims) + 4))
    for li in range(len(hidden_dims)):
        fan_in, fan_out = dims[li], dims[li + 1]
        limit = (6.0 / (fan_in + fan_out)) ** 0.5              # xavier_uniform_
        w = jax.random.uniform(next(keys), (fan_in, fan_out),
                               minval=-limit, maxval=limit, dtype=jnp.float32)
        theta = jax.random.uniform(next(keys), (1, nrow),
                                   minval=0.9, maxval=1.1, dtype=jnp.float32)
        params["layers"].append((w, theta))
    h = hidden_dims[-1]
    bound = 1.0 / (h ** 0.5)                                   # nn.Linear default
    params["w_co"] = jax.random.uniform(next(keys), (h, output_dim),
                                        minval=-bound, maxval=bound,
                                        dtype=jnp.float32)
    params["b_co"] = jax.random.uniform(next(keys), (1, output_dim),
                                        minval=-bound, maxval=bound,
                                        dtype=jnp.float32)
    params["w_co2"] = jax.random.uniform(next(keys), (h, output_dim),
                                         minval=-bound, maxval=bound,
                                         dtype=jnp.float32)
    params["b_co2"] = jax.random.uniform(next(keys), (1, output_dim),
                                         minval=-bound, maxval=bound,
                                         dtype=jnp.float32)
    return params


# ---------------------------------------------------------------------------
# Full forward pass (GraphWavelet_RSR.forward).
# ---------------------------------------------------------------------------
@functools.partial(jax.jit, static_argnames=("batch_tile",))
def graph_wavelet_rsr_forward(params, psi, psi_inv, x_features, *, batch_tile=64):
    B, N, Fin = x_features.shape
    assert N >= 2, "need at least 2 nodes for the CO / CO2 heads"
    layer_ws = [w for (w, _) in params["layers"]]
    layer_thetas = [t for (_, t) in params["layers"]]
    L = len(layer_ws)

    # --- phi hoisted out of the kernel: batch-independent, computed once. ----
    # Node dim padded to a sublane multiple (full-128 padding of the localized
    # contraction dim was considered but rejected: it would multiply the rows
    # of every x@W matmul while phi is resident and loaded once anyway).
    NPAD = _round_up(max(N, _SUBLANE), _SUBLANE)
    phi_list = [(psi_inv * th) @ psi for th in layer_thetas]    # each (N, N)
    phi_all = jnp.zeros((L, NPAD, NPAD), jnp.float32)
    phi_all = phi_all.at[:, :N, :N].set(jnp.stack(phi_list, axis=0))

    # --- per-layer weight padding (each W to its own lane multiples). --------
    feat_dims = [Fin] + [w.shape[1] for w in layer_ws]
    pads = [_round_up(d, _LANE) for d in feat_dims]
    w_pad = []
    for li, w in enumerate(layer_ws):
        fi, fo = w.shape
        wp = jnp.zeros((pads[li], pads[li + 1]), jnp.float32).at[:fi, :fo].set(w)
        w_pad.append(wp)

    # --- regressor heads (CO / CO2), lane-padded. ----------------------------
    h = params["w_co"].shape[0]
    odim = params["w_co"].shape[1]
    FPL = pads[-1]
    ODP = _round_up(odim, _LANE)
    wh = jnp.zeros((2, FPL, ODP), jnp.float32)
    wh = wh.at[0, :h, :odim].set(params["w_co"]).at[1, :h, :odim].set(params["w_co2"])
    bh = jnp.zeros((2, 1, ODP), jnp.float32)
    bh = bh.at[0, :, :odim].set(params["b_co"]).at[1, :, :odim].set(params["b_co2"])

    # --- batch tiling: node-leading layout, grid over batch tiles. -----------
    TB = min(_round_up(B, _SUBLANE), _round_up(batch_tile, _SUBLANE))
    BP = _round_up(B, TB)
    FP0 = pads[0]
    x_t = jnp.transpose(x_features, (1, 0, 2))                  # (N, B, Fin)
    x_p = jnp.zeros((NPAD, BP, FP0), jnp.float32)
    x_p = x_p.at[:N, :B, :Fin].set(x_t)

    grid = (BP // TB,)
    kernel = _make_kernel(L, N)

    in_specs = [
        pl.BlockSpec((NPAD, TB, FP0), lambda b: (0, b, 0)),       # x (tiled)
        pl.BlockSpec((L, NPAD, NPAD), lambda b: (0, 0, 0)),       # phi (resident)
    ]
    for li in range(L):
        in_specs.append(pl.BlockSpec((pads[li], pads[li + 1]),
                                     lambda b: (0, 0)))           # W_l (resident)
    in_specs.append(pl.BlockSpec((2, FPL, ODP), lambda b: (0, 0, 0)))   # heads W
    in_specs.append(pl.BlockSpec((2, 1, ODP), lambda b: (0, 0, 0)))     # heads b
    out_spec = pl.BlockSpec((2, TB, ODP), lambda b: (0, b, 0))

    # Advisory cost estimate for the XLA scheduler.
    flops = 0
    for li in range(L):
        flops += 2 * BP * NPAD * pads[li] * pads[li + 1]          # x @ W
        rows = NPAD if li + 1 < L else 2
        flops += 2 * rows * NPAD * BP * pads[li + 1]              # phi @ filtered
    flops += 2 * 2 * BP * FPL * ODP                               # heads
    bytes_accessed = 4 * (x_p.size + phi_all.size + sum(w.size for w in w_pad)
                          + wh.size + bh.size + 2 * BP * ODP)

    preds_pad = pl.pallas_call(
        kernel,
        out_shape=jax.ShapeDtypeStruct((2, BP, ODP), jnp.float32),
        grid=grid,
        in_specs=in_specs,
        out_specs=out_spec,
        compiler_params=pltpu.CompilerParams(
            dimension_semantics=("parallel",),
            vmem_limit_bytes=48 * 1024 * 1024),
        cost_estimate=pl.CostEstimate(flops=flops, transcendentals=0,
                                      bytes_accessed=bytes_accessed),
    )(x_p, phi_all, *w_pad, wh, bh)

    # (2, BP, ODP) -> (B, 2, odim)  (== cat(unsqueeze(CO), unsqueeze(CO2), dim=1))
    return jnp.transpose(preds_pad[:, :B, :odim], (1, 0, 2))


# ---------------------------------------------------------------------------
# Pure-JAX reference (correctness check only).
# ---------------------------------------------------------------------------
def _reference_forward(params, psi, psi_inv, x):
    for (w, theta) in params["layers"]:
        phi = (psi_inv * theta) @ psi
        filtered = jnp.einsum('bnf,fg->bng', x, w)
        localized = jnp.einsum('nm,bmf->bnf', phi, filtered)
        x = jnp.where(localized >= 0.0, localized, 0.2 * localized)
    p_co = x[:, -2, :] @ params["w_co"] + params["b_co"]
    p_co2 = x[:, -1, :] @ params["w_co2"] + params["b_co2"]
    return jnp.stack([p_co, p_co2], axis=1)


if __name__ == "__main__":
    # Small, self-consistent shapes:
    #   wavelets_shape = [16, 8] -> N nodes = wavelets_col = 8
    #   input_shape = [8, 4], hidden_dim_sgwnn = [32, 8], output_shape = [2, 1]
    wavelets_shape = (16, 8)
    input_dim = 4
    hidden_dims = [32, 8]
    output_dim = 1
    batch = 2
    n_nodes = wavelets_shape[1]

    root = jax.random.PRNGKey(0)
    k_psi, k_psi_inv, k_x, k_params = jax.random.split(root, 4)

    psi = jax.random.normal(k_psi, (wavelets_shape[0], wavelets_shape[1]),
                            dtype=jnp.float32)                 # dense wavelets
    psi_inv = jax.random.normal(k_psi_inv,
                                (wavelets_shape[1], wavelets_shape[0]),
                                dtype=jnp.float32)             # dense inverse
    x_features = jax.random.normal(k_x, (batch, n_nodes, input_dim),
                                   dtype=jnp.float32)

    params = init_params(k_params, input_dim, hidden_dims, output_dim,
                         wavelets_shape)

    preds = graph_wavelet_rsr_forward(params, psi, psi_inv, x_features)
    preds = jax.block_until_ready(preds)
    assert preds.shape == (batch, 2, output_dim), preds.shape

    ref = _reference_forward(params, psi, psi_inv, x_features)
    np.testing.assert_allclose(np.asarray(preds), np.asarray(ref),
                               rtol=1e-3, atol=1e-3)
    print("KERNEL_OK")
</pallas_src>

<mosaic_0001>
module attributes {stable_mosaic.version = 11 : i64} {
  func.func @kernel(%arg0: i32, %arg1: memref<8x8x128xf32, #tpu.memory_space<vmem>>, %arg2: memref<2x8x8xf32, #tpu.memory_space<vmem>>, %arg3: memref<128x128xf32, #tpu.memory_space<vmem>>, %arg4: memref<128x128xf32, #tpu.memory_space<vmem>>, %arg5: memref<2x128x128xf32, #tpu.memory_space<vmem>>, %arg6: memref<2x1x128xf32, #tpu.memory_space<vmem>>, %arg7: memref<2x8x128xf32, #tpu.memory_space<vmem>>) attributes {dimension_semantics = [#tpu.dimension_semantics<parallel>], iteration_bounds = array<i64: 1>, scalar_prefetch = 0 : i64, scratch_operands = 0 : i64, tpu.core_type = #tpu.core_type<tc>, window_params = [{transform_indices = @transform_0, window_bounds = array<i64: 8, 8, 128>}, {pipeline_mode = #tpu.pipeline_mode<synchronous>, transform_indices = @transform_1, window_bounds = array<i64: 2, 8, 8>}, {pipeline_mode = #tpu.pipeline_mode<synchronous>, transform_indices = @transform_2, window_bounds = array<i64: 128, 128>}, {pipeline_mode = #tpu.pipeline_mode<synchronous>, transform_indices = @transform_3, window_bounds = array<i64: 128, 128>}, {pipeline_mode = #tpu.pipeline_mode<synchronous>, transform_indices = @transform_4, window_bounds = array<i64: 2, 128, 128>}, {pipeline_mode = #tpu.pipeline_mode<synchronous>, transform_indices = @transform_5, window_bounds = array<i64: 2, 1, 128>}, {transform_indices = @transform_6, window_bounds = array<i64: 2, 8, 128>}]} {
    %c0 = arith.constant 0 : index
    %c0_0 = arith.constant 0 : index
    %c0_1 = arith.constant 0 : index
    %0 = vector.load %arg1[%c0, %c0_0, %c0_1] : memref<8x8x128xf32, #tpu.memory_space<vmem>>, vector<8x8x128xf32>
    %c0_2 = arith.constant 0 : index
    %c0_3 = arith.constant 0 : index
    %1 = vector.load %arg3[%c0_2, %c0_3] : memref<128x128xf32, #tpu.memory_space<vmem>>, vector<128x128xf32>
    %2 = vector.shape_cast %0 : vector<8x8x128xf32> to vector<64x128xf32>
    %cst = arith.constant dense<0.000000e+00> : vector<64x128xf32>
    %3 = tpu.matmul %2, %1, %cst {dimension_numbers = #tpu.dot_dimension_numbers<[1], [0], [0], [1], [0, 0, 1, 1], [], []>} : vector<64x128xf32>, vector<128x128xf32>, vector<64x128xf32> -> vector<64x128xf32>
    %4 = vector.shape_cast %3 : vector<64x128xf32> to vector<8x1024xf32>
    %c0_4 = arith.constant 0 : index
    %c0_5 = arith.constant 0 : index
    %c0_6 = arith.constant 0 : index
    %5 = vector.load %arg2[%c0_4, %c0_5, %c0_6] : memref<2x8x8xf32, #tpu.memory_space<vmem>>, vector<1x8x8xf32>
    %6 = vector.shape_cast %5 : vector<1x8x8xf32> to vector<8x8xf32>
    %cst_7 = arith.constant dense<0.000000e+00> : vector<8x1024xf32>
    %7 = tpu.matmul %6, %4, %cst_7 {dimension_numbers = #tpu.dot_dimension_numbers<[1], [0], [0], [1], [0, 0, 1, 1], [], []>} : vector<8x8xf32>, vector<8x1024xf32>, vector<8x1024xf32> -> vector<8x1024xf32>
    %cst_8 = arith.constant 0.000000e+00 : f32
    %8 = vector.broadcast %cst_8 : f32 to vector<8x1024xf32>
    %9 = arith.cmpf oge, %7, %8 : vector<8x1024xf32>
    %cst_9 = arith.constant 2.000000e-01 : f32
    %10 = vector.broadcast %cst_9 : f32 to vector<8x1024xf32>
    %11 = arith.mulf %10, %7 : vector<8x1024xf32>
    %12 = arith.select %9, %7, %11 : vector<8x1024xi1>, vector<8x1024xf32>
    %13 = vector.shape_cast %12 : vector<8x1024xf32> to vector<8x8x128xf32>
    %c0_10 = arith.constant 0 : index
    %c0_11 = arith.constant 0 : index
    %14 = vector.load %arg4[%c0_10, %c0_11] : memref<128x128xf32, #tpu.memory_space<vmem>>, vector<128x128xf32>
    %15 = vector.shape_cast %13 : vector<8x8x128xf32> to vector<64x128xf32>
    %cst_12 = arith.constant dense<0.000000e+00> : vector<64x128xf32>
    %16 = tpu.matmul %15, %14, %cst_12 {dimension_numbers = #tpu.dot_dimension_numbers<[1], [0], [0], [1], [0, 0, 1, 1], [], []>} : vector<64x128xf32>, vector<128x128xf32>, vector<64x128xf32> -> vector<64x128xf32>
    %17 = vector.shape_cast %16 : vector<64x128xf32> to vector<8x1024xf32>
    %c1 = arith.constant 1 : index
    %c0_13 = arith.constant 0 : index
    %c0_14 = arith.constant 0 : index
    %18 = vector.load %arg2[%c1, %c0_13, %c0_14] : memref<2x8x8xf32, #tpu.memory_space<vmem>>, vector<1x8x8xf32>
    %19 = vector.shape_cast %18 : vector<1x8x8xf32> to vector<8x8xf32>
    %20 = vector.extract_strided_slice %19 {offsets = [6, 0], sizes = [2, 8], strides = [1, 1]} : vector<8x8xf32> to vector<2x8xf32>
    %cst_15 = arith.constant dense<0.000000e+00> : vector<2x1024xf32>
    %21 = tpu.matmul %20, %17, %cst_15 {dimension_numbers = #tpu.dot_dimension_numbers<[1], [0], [0], [1], [0, 0, 1, 1], [], []>} : vector<2x8xf32>, vector<8x1024xf32>, vector<2x1024xf32> -> vector<2x1024xf32>
    %cst_16 = arith.constant 0.000000e+00 : f32
    %22 = vector.broadcast %cst_16 : f32 to vector<2x1024xf32>
    %23 = arith.cmpf oge, %21, %22 : vector<2x1024xf32>
    %cst_17 = arith.constant 2.000000e-01 : f32
    %24 = vector.broadcast %cst_17 : f32 to vector<2x1024xf32>
    %25 = arith.mulf %24, %21 : vector<2x1024xf32>
    %26 = arith.select %23, %21, %25 : vector<2x1024xi1>, vector<2x1024xf32>
    %27 = vector.shape_cast %26 : vector<2x1024xf32> to vector<2x8x128xf32>
    %28 = vector.extract_strided_slice %27 {offsets = [0, 0, 0], sizes = [1, 8, 128], strides = [1, 1, 1]} : vector<2x8x128xf32> to vector<1x8x128xf32>
    %29 = vector.shape_cast %28 : vector<1x8x128xf32> to vector<8x128xf32>
    %c0_18 = arith.constant 0 : index
    %c0_19 = arith.constant 0 : index
    %c0_20 = arith.constant 0 : index
    %30 = vector.load %arg5[%c0_18, %c0_19, %c0_20] : memref<2x128x128xf32, #tpu.memory_space<vmem>>, vector<1x128x128xf32>
    %31 = vector.shape_cast %30 : vector<1x128x128xf32> to vector<128x128xf32>
    %cst_21 = arith.constant dense<0.000000e+00> : vector<8x128xf32>
    %32 = tpu.matmul %29, %31, %cst_21 {dimension_numbers = #tpu.dot_dimension_numbers<[1], [0], [0], [1], [0, 0, 1, 1], [], []>} : vector<8x128xf32>, vector<128x128xf32>, vector<8x128xf32> -> vector<8x128xf32>
    %c0_22 = arith.constant 0 : index
    %c0_23 = arith.constant 0 : index
    %c0_24 = arith.constant 0 : index
    %33 = vector.load %arg6[%c0_22, %c0_23, %c0_24] : memref<2x1x128xf32, #tpu.memory_space<vmem>>, vector<1x1x128xf32>
    %34 = vector.shape_cast %33 : vector<1x1x128xf32> to vector<1x128xf32>
    %35 = vector.broadcast %34 : vector<1x128xf32> to vector<8x128xf32>
    %36 = arith.addf %32, %35 : vector<8x128xf32>
    %c0_25 = arith.constant 0 : index
    %c0_26 = arith.constant 0 : index
    %c0_27 = arith.constant 0 : index
    %37 = vector.load %arg7[%c0_25, %c0_26, %c0_27] : memref<2x8x128xf32, #tpu.memory_space<vmem>>, vector<1x8x128xf32>
    %38 = vector.shape_cast %37 : vector<1x8x128xf32> to vector<8x128xf32>
    %39 = vector.shape_cast %36 : vector<8x128xf32> to vector<1x8x128xf32>
    tpu.vector_store %arg7[%c0_25, %c0_26, %c0_27], %39 {strides = array<i32>} : memref<2x8x128xf32, #tpu.memory_space<vmem>>, vector<1x8x128xf32>,
    %40 = vector.extract_strided_slice %27 {offsets = [1, 0, 0], sizes = [1, 8, 128], strides = [1, 1, 1]} : vector<2x8x128xf32> to vector<1x8x128xf32>
    %41 = vector.shape_cast %40 : vector<1x8x128xf32> to vector<8x128xf32>
    %c1_28 = arith.constant 1 : index
    %c0_29 = arith.constant 0 : index
    %c0_30 = arith.constant 0 : index
    %42 = vector.load %arg5[%c1_28, %c0_29, %c0_30] : memref<2x128x128xf32, #tpu.memory_space<vmem>>, vector<1x128x128xf32>
    %43 = vector.shape_cast %42 : vector<1x128x128xf32> to vector<128x128xf32>
    %cst_31 = arith.constant dense<0.000000e+00> : vector<8x128xf32>
    %44 = tpu.matmul %41, %43, %cst_31 {dimension_numbers = #tpu.dot_dimension_numbers<[1], [0], [0], [1], [0, 0, 1, 1], [], []>} : vector<8x128xf32>, vector<128x128xf32>, vector<8x128xf32> -> vector<8x128xf32>
    %c1_32 = arith.constant 1 : index
    %c0_33 = arith.constant 0 : index
    %c0_34 = arith.constant 0 : index
    %45 = vector.load %arg6[%c1_32, %c0_33, %c0_34] : memref<2x1x128xf32, #tpu.memory_space<vmem>>, vector<1x1x128xf32>
    %46 = vector.shape_cast %45 : vector<1x1x128xf32> to vector<1x128xf32>
    %47 = vector.broadcast %46 : vector<1x128xf32> to vector<8x128xf32>
    %48 = arith.addf %44, %47 : vector<8x128xf32>
    %c1_35 = arith.constant 1 : index
    %c0_36 = arith.constant 0 : index
    %c0_37 = arith.constant 0 : index
    %49 = vector.load %arg7[%c1_35, %c0_36, %c0_37] : memref<2x8x128xf32, #tpu.memory_space<vmem>>, vector<1x8x128xf32>
    %50 = vector.shape_cast %49 : vector<1x8x128xf32> to vector<8x128xf32>
    %51 = vector.shape_cast %48 : vector<8x128xf32> to vector<1x8x128xf32>
    tpu.vector_store %arg7[%c1_35, %c0_36, %c0_37], %51 {strides = array<i32>} : memref<2x8x128xf32, #tpu.memory_space<vmem>>, vector<1x8x128xf32>,
    return
  }
  func.func @transform_0(%arg0: i32) -> (i32, i32, i32) {
    %c0_i32 = arith.constant 0 : i32
    %c0_i32_0 = arith.constant 0 : i32
    %c0_i32_1 = arith.constant 0 : i32
    return %c0_i32, %arg0, %c0_i32_0 : i32, i32, i32
  }
  func.func @transform_1(%arg0: i32) -> (i32, i32, i32) {
    %c0_i32 = arith.constant 0 : i32
    %c0_i32_0 = arith.constant 0 : i32
    %c0_i32_1 = arith.constant 0 : i32
    %c0_i32_2 = arith.constant 0 : i32
    return %c0_i32, %c0_i32_0, %c0_i32_1 : i32, i32, i32
  }
  func.func @transform_2(%arg0: i32) -> (i32, i32) {
    %c0_i32 = arith.constant 0 : i32
    %c0_i32_0 = arith.constant 0 : i32
    %c0_i32_1 = arith.constant 0 : i32
    return %c0_i32, %c0_i32_0 : i32, i32
  }
  func.func @transform_3(%arg0: i32) -> (i32, i32) {
    %c0_i32 = arith.constant 0 : i32
    %c0_i32_0 = arith.constant 0 : i32
    %c0_i32_1 = arith.constant 0 : i32
    return %c0_i32, %c0_i32_0 : i32, i32
  }
  func.func @transform_4(%arg0: i32) -> (i32, i32, i32) {
    %c0_i32 = arith.constant 0 : i32
    %c0_i32_0 = arith.constant 0 : i32
    %c0_i32_1 = arith.constant 0 : i32
    %c0_i32_2 = arith.constant 0 : i32
    return %c0_i32, %c0_i32_0, %c0_i32_1 : i32, i32, i32
  }
  func.func @transform_5(%arg0: i32) -> (i32, i32, i32) {
    %c0_i32 = arith.constant 0 : i32
    %c0_i32_0 = arith.constant 0 : i32
    %c0_i32_1 = arith.constant 0 : i32
    %c0_i32_2 = arith.constant 0 : i32
    return %c0_i32, %c0_i32_0, %c0_i32_1 : i32, i32, i32
  }
  func.func @transform_6(%arg0: i32) -> (i32, i32, i32) {
    %c0_i32 = arith.constant 0 : i32
    %c0_i32_0 = arith.constant 0 : i32
    %c0_i32_1 = arith.constant 0 : i32
    return %c0_i32, %arg0, %c0_i32_0 : i32, i32, i32
  }
}

</mosaic_0001>

<llo_original>
// kernel: graph_wavelet_rsr_forward.1
$region0: #{graph_wavelet_rsr_forward.1}
  #allocation0 [shape = 'u32[]', space=smem, size = 0x4, offset = 0x4, fixed_abs, tag = 'smem constant byte address 0x4 - core index']
  #allocation1 [shape = 'u32[72,128]{1,0:T(1,128)}', space=vmem, size = 0x9000, scoped, tag = 'internal scratch']
  %s0 = inlined_call_operand.vmem [shape: f32[8,8,128], index: 0, kind: input, shape index: {}]
  %s1 = inlined_call_operand.vmem [shape: f32[2,8,8], index: 1, kind: input, shape index: {}]
  %s2 = inlined_call_operand.vmem [shape: f32[128,128], index: 2, kind: input, shape index: {}]
  %s3 = inlined_call_operand.vmem [shape: f32[128,128], index: 3, kind: input, shape index: {}]
  %s4 = inlined_call_operand.vmem [shape: f32[2,128,128], index: 4, kind: input, shape index: {}]
  %s5 = inlined_call_operand.vmem [shape: f32[2,1,128], index: 5, kind: input, shape index: {}]
  %s6 = inlined_call_operand.vmem [shape: f32[2,8,128], index: 6, kind: output, shape index: {}]
  %s7 = sld [smem:[#allocation0]]
  $region34: #{graph_wavelet_rsr_forward.1} parent=0
    _
  %s9 = ssub.s32 1, %s7
  %s10 = scalar_select 0, %s9, %s7
  // Predicated region
  $region2: #{graph_wavelet_rsr_forward.1} parent=0 // pred_check
    _
  $region3: #{graph_wavelet_rsr_forward.1} parent=0 // pred_check_branch
    %12 = sbr.rel (0) target = $region5
  $region4: #{graph_wavelet_rsr_forward.1} parent=0 // pred_region
    _
  $region5: #{graph_wavelet_rsr_forward.1} parent=0 // pred_fallthru
    _
  // Predicated region
  $region6: #{graph_wavelet_rsr_forward.1} parent=0 // pred_check
    _
  $region7: #{graph_wavelet_rsr_forward.1} parent=0 // pred_check_branch
    %14 = sbr.rel (0) target = $region9
  $region8: #{graph_wavelet_rsr_forward.1} parent=0 // pred_region
    _
  $region9: #{graph_wavelet_rsr_forward.1} parent=0 // pred_fallthru
    _
  // Predicated region
  $region10: #{graph_wavelet_rsr_forward.1} parent=0 // pred_check
    _
  $region11: #{graph_wavelet_rsr_forward.1} parent=0 // pred_check_branch
    %16 = sbr.rel (0) target = $region13
  $region12: #{graph_wavelet_rsr_forward.1} parent=0 // pred_region
    _
  $region13: #{graph_wavelet_rsr_forward.1} parent=0 // pred_fallthru
    _
  // Predicated region
  $region14: #{graph_wavelet_rsr_forward.1} parent=0 // pred_check
    _
  $region15: #{graph_wavelet_rsr_forward.1} parent=0 // pred_check_branch
    %18 = sbr.rel (0) target = $region17
  $region16: #{graph_wavelet_rsr_forward.1} parent=0 // pred_region
    _
  $region17: #{graph_wavelet_rsr_forward.1} parent=0 // pred_fallthru
    _
  // Predicated region
  $region18: #{graph_wavelet_rsr_forward.1} parent=0 // pred_check
    _
  $region19: #{graph_wavelet_rsr_forward.1} parent=0 // pred_check_branch
    %20 = sbr.rel (0) target = $region21
  $region20: #{graph_wavelet_rsr_forward.1} parent=0 // pred_region
    _
  $region21: #{graph_wavelet_rsr_forward.1} parent=0 // pred_fallthru
    _
  // Predicated region
  $region22: #{graph_wavelet_rsr_forward.1} parent=0 // pred_check
    _
  $region23: #{graph_wavelet_rsr_forward.1} parent=0 // pred_check_branch
    %22 = sbr.rel (0) target = $region25
  $region24: #{graph_wavelet_rsr_forward.1} parent=0 // pred_region
    _
  $region25: #{graph_wavelet_rsr_forward.1} parent=0 // pred_fallthru
    _
  %v23 = vld [vmem:[%s0] sm:$0xff]
  %v24 = vld [vmem:[%s0 + $0x8] sm:$0xff]
  %v25 = vld [vmem:[%s0 + $0x10] sm:$0xff]
  %v26 = vld [vmem:[%s0 + $0x18] sm:$0xff]
  %v27 = vld [vmem:[%s0 + $0x20] sm:$0xff]
  %v28 = vld [vmem:[%s0 + $0x28] sm:$0xff]
  %v29 = vld [vmem:[%s0 + $0x30] sm:$0xff]
  %v30 = vld [vmem:[%s0 + $0x38] sm:$0xff]
  %v31 = vld [vmem:[%s2] sm:$0xff]
  %v32 = vld [vmem:[%s2 + $0x8] sm:$0xff]
  %v33 = vld [vmem:[%s2 + $0x10] sm:$0xff]
  %v34 = vld [vmem:[%s2 + $0x18] sm:$0xff]
  %v35 = vld [vmem:[%s2 + $0x20] sm:$0xff]
  %v36 = vld [vmem:[%s2 + $0x28] sm:$0xff]
  %v37 = vld [vmem:[%s2 + $0x30] sm:$0xff]
  %v38 = vld [vmem:[%s2 + $0x38] sm:$0xff]
  %v39 = vld [vmem:[%s2 + $0x40] sm:$0xff]
  %v40 = vld [vmem:[%s2 + $0x48] sm:$0xff]
  %v41 = vld [vmem:[%s2 + $0x50] sm:$0xff]
  %v42 = vld [vmem:[%s2 + $0x58] sm:$0xff]
  %v43 = vld [vmem:[%s2 + $0x60] sm:$0xff]
  %v44 = vld [vmem:[%s2 + $0x68] sm:$0xff]
  %v45 = vld [vmem:[%s2 + $0x70] sm:$0xff]
  %v46 = vld [vmem:[%s2 + $0x78] sm:$0xff]
  %47 = vmatpush.msra.mxu0 %v46
  %48 = vmatpush.msra.mxu0 %v45
  %49 = vmatpush.msra.mxu0 %v44
  %50 = vmatpush.msra.mxu0 %v43
  %51 = vmatpush.msra.mxu0 %v42
  %52 = vmatpush.msra.mxu0 %v41
  %53 = vmatpush.msra.mxu0 %v40
  %54 = vmatpush.msra.mxu0 %v39
  %55 = vmatpush.msra.mxu0 %v38
  %56 = vmatpush.msra.mxu0 %v37
  %57 = vmatpush.msra.mxu0 %v36
  %58 = vmatpush.msra.mxu0 %v35
  %59 = vmatpush.msra.mxu0 %v34
  %60 = vmatpush.msra.mxu0 %v33
  %61 = vmatpush.msra.mxu0 %v32
  %62 = vmatpush.msra.mxu0 %v31
  %63 = vmatmul.f32.gmra.mxu0 %v23
  %v64 = vpop.f32.mrf.mxu0
  %v65 = vadd.f32 0.0, %v64
  %66 = vmatmul.f32.gmra.mxu0 %v24
  %v67 = vpop.f32.mrf.mxu0
  %v68 = vadd.f32 0.0, %v67
  %69 = vmatmul.f32.gmra.mxu0 %v25
  %v70 = vpop.f32.mrf.mxu0
  %v71 = vadd.f32 0.0, %v70
  %72 = vmatmul.f32.gmra.mxu0 %v26
  %v73 = vpop.f32.mrf.mxu0
  %v74 = vadd.f32 0.0, %v73
  %75 = vmatmul.f32.gmra.mxu0 %v27
  %v76 = vpop.f32.mrf.mxu0
  %v77 = vadd.f32 0.0, %v76
  %78 = vmatmul.f32.gmra.mxu0 %v28
  %v79 = vpop.f32.mrf.mxu0
  %v80 = vadd.f32 0.0, %v79
  %81 = vmatmul.f32.gmra.mxu0 %v29
  %v82 = vpop.f32.mrf.mxu0
  %v83 = vadd.f32 0.0, %v82
  %84 = vmatmul.f32.gmra.mxu0 %v30
  %v85 = vpop.f32.mrf.mxu0
  %v86 = vadd.f32 0.0, %v85
  %87 = vdwg.mxu0
  %v88 = vld [vmem:[%s1] sm:$0xff]
  %97 = vst [vmem:[#allocation1] ss:$9 sm:$0xff] %v65
  %s98 = scalar_lea.vmem [#allocation1], 1
  %99 = vst [vmem:[%s98] ss:$9 sm:$0xff] %v68
  %s100 = scalar_lea.vmem [#allocation1], 2
  %101 = vst [vmem:[%s100] ss:$9 sm:$0xff] %v71
  %s102 = scalar_lea.vmem [#allocation1], 3
  %103 = vst [vmem:[%s102] ss:$9 sm:$0xff] %v74
  %s104 = scalar_lea.vmem [#allocation1], 4
  %105 = vst [vmem:[%s104] ss:$9 sm:$0xff] %v77
  %s106 = scalar_lea.vmem [#allocation1], 5
  %107 = vst [vmem:[%s106] ss:$9 sm:$0xff] %v80
  %s108 = scalar_lea.vmem [#allocation1], 6
  %109 = vst [vmem:[%s108] ss:$9 sm:$0xff] %v83
  %s110 = scalar_lea.vmem [#allocation1], 7
  %111 = vst [vmem:[%s110] ss:$9 sm:$0xff] %v86
  %v112 = vld [vmem:[#allocation1] sm:$0xff]
  %v113 = vld [vmem:[#allocation1 + $0x9] sm:$0xff]
  %v114 = vld [vmem:[#allocation1 + $0x12] sm:$0xff]
  %v115 = vld [vmem:[#allocation1 + $0x1b] sm:$0xff]
  %v116 = vld [vmem:[#allocation1 + $0x24] sm:$0xff]
  %v117 = vld [vmem:[#allocation1 + $0x2d] sm:$0xff]
  %v118 = vld [vmem:[#allocation1 + $0x36] sm:$0xff]
  %v119 = vld [vmem:[#allocation1 + $0x3f] sm:$0xff]
  %vm128 = vcmask 64512
  %v130 = vsel %vm128, %v88, 0
  %132 = vmatpush.msra.mxu0 0.0
  %133 = vmatpush.msra.mxu0 0.0
  %134 = vmatpush.msra.mxu0 0.0
  %135 = vmatpush.msra.mxu0 0.0
  %136 = vmatpush.msra.mxu0 0.0
  %137 = vmatpush.msra.mxu0 0.0
  %138 = vmatpush.msra.mxu0 0.0
  %139 = vmatpush.msra.mxu0 0.0
  %140 = vmatpush.msra.mxu0 0.0
  %141 = vmatpush.msra.mxu0 0.0
  %142 = vmatpush.msra.mxu0 0.0
  %143 = vmatpush.msra.mxu0 0.0
  %144 = vmatpush.msra.mxu0 0.0
  %145 = vmatpush.msra.mxu0 0.0
  %146 = vmatpush.msra.mxu0 0.0
  %147 = vmatpush.msra.mxu0 %v112
  %148 = vmatmul.f32.gmra.mxu0 %v130
  %v149 = vpop.f32.mrf.mxu0
  %v150 = vadd.f32 0.0, %v149
  %151 = vdwg.mxu0
  %152 = vmatpush.msra.mxu0 0.0
  %153 = vmatpush.msra.mxu0 0.0
  %154 = vmatpush.msra.mxu0 0.0
  %155 = vmatpush.msra.mxu0 0.0
  %156 = vmatpush.msra.mxu0 0.0
  %157 = vmatpush.msra.mxu0 0.0
  %158 = vmatpush.msra.mxu0 0.0
  %159 = vmatpush.msra.mxu0 0.0
  %160 = vmatpush.msra.mxu0 0.0
  %161 = vmatpush.msra.mxu0 0.0
  %162 = vmatpush.msra.mxu0 0.0
  %163 = vmatpush.msra.mxu0 0.0
  %164 = vmatpush.msra.mxu0 0.0
  %165 = vmatpush.msra.mxu0 0.0
  %166 = vmatpush.msra.mxu0 0.0
  %167 = vmatpush.msra.mxu0 %v113
  %168 = vmatmul.f32.gmra.mxu0 %v130
  %v169 = vpop.f32.mrf.mxu0
  %v170 = vadd.f32 0.0, %v169
  %171 = vdwg.mxu0
  %172 = vmatpush.msra.mxu0 0.0
  %173 = vmatpush.msra.mxu0 0.0
  %174 = vmatpush.msra.mxu0 0.0
  %175 = vmatpush.msra.mxu0 0.0
  %176 = vmatpush.msra.mxu0 0.0
  %177 = vmatpush.msra.mxu0 0.0
  %178 = vmatpush.msra.mxu0 0.0
  %179 = vmatpush.msra.mxu0 0.0
  %180 = vmatpush.msra.mxu0 0.0
  %181 = vmatpush.msra.mxu0 0.0
  %182 = vmatpush.msra.mxu0 0.0
  %183 = vmatpush.msra.mxu0 0.0
  %184 = vmatpush.msra.mxu0 0.0
  %185 = vmatpush.msra.mxu0 0.0
  %186 = vmatpush.msra.mxu0 0.0
  %187 = vmatpush.msra.mxu0 %v114
  %188 = vmatmul.f32.gmra.mxu0 %v130
  %v189 = vpop.f32.mrf.mxu0
  %v190 = vadd.f32 0.0, %v189
  %191 = vdwg.mxu0
  %192 = vmatpush.msra.mxu0 0.0
  %193 = vmatpush.msra.mxu0 0.0
  %194 = vmatpush.msra.mxu0 0.0
  %195 = vmatpush.msra.mxu0 0.0
  %196 = vmatpush.msra.mxu0 0.0
  %197 = vmatpush.msra.mxu0 0.0
  %198 = vmatpush.msra.mxu0 0.0
  %199 = vmatpush.msra.mxu0 0.0
  %200 = vmatpush.msra.mxu0 0.0
  %201 = vmatpush.msra.mxu0 0.0
  %202 = vmatpush.msra.mxu0 0.0
  %203 = vmatpush.msra.mxu0 0.0
  %204 = vmatpush.msra.mxu0 0.0
  %205 = vmatpush.msra.mxu0 0.0
  %206 = vmatpush.msra.mxu0 0.0
  %207 = vmatpush.msra.mxu0 %v115
  %208 = vmatmul.f32.gmra.mxu0 %v130
  %v209 = vpop.f32.mrf.mxu0
  %v210 = vadd.f32 0.0, %v209
  %211 = vdwg.mxu0
  %212 = vmatpush.msra.mxu0 0.0
  %213 = vmatpush.msra.mxu0 0.0
  %214 = vmatpush.msra.mxu0 0.0
  %215 = vmatpush.msra.mxu0 0.0
  %216 = vmatpush.msra.mxu0 0.0
  %217 = vmatpush.msra.mxu0 0.0
  %218 = vmatpush.msra.mxu0 0.0
  %219 = vmatpush.msra.mxu0 0.0
  %220 = vmatpush.msra.mxu0 0.0
  %221 = vmatpush.msra.mxu0 0.0
  %222 = vmatpush.msra.mxu0 0.0
  %223 = vmatpush.msra.mxu0 0.0
  %224 = vmatpush.msra.mxu0 0.0
  %225 = vmatpush.msra.mxu0 0.0
  %226 = vmatpush.msra.mxu0 0.0
  %227 = vmatpush.msra.mxu0 %v116
  %228 = vmatmul.f32.gmra.mxu0 %v130
  %v229 = vpop.f32.mrf.mxu0
  %v230 = vadd.f32 0.0, %v229
  %231 = vdwg.mxu0
  %232 = vmatpush.msra.mxu0 0.0
  %233 = vmatpush.msra.mxu0 0.0
  %234 = vmatpush.msra.mxu0 0.0
  %235 = vmatpush.msra.mxu0 0.0
  %236 = vmatpush.msra.mxu0 0.0
  %237 = vmatpush.msra.mxu0 0.0
  %238 = vmatpush.msra.mxu0 0.0
  %239 = vmatpush.msra.mxu0 0.0
  %240 = vmatpush.msra.mxu0 0.0
  %241 = vmatpush.msra.mxu0 0.0
  %242 = vmatpush.msra.mxu0 0.0
  %243 = vmatpush.msra.mxu0 0.0
  %244 = vmatpush.msra.mxu0 0.0
  %245 = vmatpush.msra.mxu0 0.0
  %246 = vmatpush.msra.mxu0 0.0
  %247 = vmatpush.msra.mxu0 %v117
  %248 = vmatmul.f32.gmra.mxu0 %v130
  %v249 = vpop.f32.mrf.mxu0
  %v250 = vadd.f32 0.0, %v249
  %251 = vdwg.mxu0
  %252 = vmatpush.msra.mxu0 0.0
  %253 = vmatpush.msra.mxu0 0.0
  %254 = vmatpush.msra.mxu0 0.0
  %255 = vmatpush.msra.mxu0 0.0
  %256 = vmatpush.msra.mxu0 0.0
  %257 = vmatpush.msra.mxu0 0.0
  %258 = vmatpush.msra.mxu0 0.0
  %259 = vmatpush.msra.mxu0 0.0
  %260 = vmatpush.msra.mxu0 0.0
  %261 = vmatpush.msra.mxu0 0.0
  %262 = vmatpush.msra.mxu0 0.0
  %263 = vmatpush.msra.mxu0 0.0
  %264 = vmatpush.msra.mxu0 0.0
  %265 = vmatpush.msra.mxu0 0.0
  %266 = vmatpush.msra.mxu0 0.0
  %267 = vmatpush.msra.mxu0 %v118
  %268 = vmatmul.f32.gmra.mxu0 %v130
  %v269 = vpop.f32.mrf.mxu0
  %v270 = vadd.f32 0.0, %v269
  %271 = vdwg.mxu0
  %272 = vmatpush.msra.mxu0 0.0
  %273 = vmatpush.msra.mxu0 0.0
  %274 = vmatpush.msra.mxu0 0.0
  %275 = vmatpush.msra.mxu0 0.0
  %276 = vmatpush.msra.mxu0 0.0
  %277 = vmatpush.msra.mxu0 0.0
  %278 = vmatpush.msra.mxu0 0.0
  %279 = vmatpush.msra.mxu0 0.0
  %280 = vmatpush.msra.mxu0 0.0
  %281 = vmatpush.msra.mxu0 0.0
  %282 = vmatpush.msra.mxu0 0.0
  %283 = vmatpush.msra.mxu0 0.0
  %284 = vmatpush.msra.mxu0 0.0
  %285 = vmatpush.msra.mxu0 0.0
  %286 = vmatpush.msra.mxu0 0.0
  %287 = vmatpush.msra.mxu0 %v119
  %288 = vmatmul.f32.gmra.mxu0 %v130
  %v289 = vpop.f32.mrf.mxu0
  %v290 = vadd.f32 0.0, %v289
  %291 = vdwg.mxu0
  %vm292 = vcmp.ge.f32.partialorder %v150, 0.0
  %vm293 = vcmp.ge.f32.partialorder %v170, 0.0
  %vm294 = vcmp.ge.f32.partialorder %v190, 0.0
  %vm295 = vcmp.ge.f32.partialorder %v210, 0.0
  %vm296 = vcmp.ge.f32.partialorder %v230, 0.0
  %vm297 = vcmp.ge.f32.partialorder %v250, 0.0
  %vm298 = vcmp.ge.f32.partialorder %v270, 0.0
  %vm299 = vcmp.ge.f32.partialorder %v290, 0.0
  %v300 = vmul.f32 %v150, 0.2
  %v301 = vmul.f32 %v170, 0.2
  %v302 = vmul.f32 %v190, 0.2
  %v303 = vmul.f32 %v210, 0.2
  %v304 = vmul.f32 %v230, 0.2
  %v305 = vmul.f32 %v250, 0.2
  %v306 = vmul.f32 %v270, 0.2
  %v307 = vmul.f32 %v290, 0.2
  %v308 = vsel %vm292, %v150, %v300
  %v309 = vsel %vm293, %v170, %v301
  %v310 = vsel %vm294, %v190, %v302
  %v311 = vsel %vm295, %v210, %v303
  %v312 = vsel %vm296, %v230, %v304
  %v313 = vsel %vm297, %v250, %v305
  %v314 = vsel %vm298, %v270, %v306
  %v315 = vsel %vm299, %v290, %v307
  %v316 = vld [vmem:[%s3] sm:$0xff]
  %v317 = vld [vmem:[%s3 + $0x8] sm:$0xff]
  %v318 = vld [vmem:[%s3 + $0x10] sm:$0xff]
  %v319 = vld [vmem:[%s3 + $0x18] sm:$0xff]
  %v320 = vld [vmem:[%s3 + $0x20] sm:$0xff]
  %v321 = vld [vmem:[%s3 + $0x28] sm:$0xff]
  %v322 = vld [vmem:[%s3 + $0x30] sm:$0xff]
  %v323 = vld [vmem:[%s3 + $0x38] sm:$0xff]
  %v324 = vld [vmem:[%s3 + $0x40] sm:$0xff]
  %v325 = vld [vmem:[%s3 + $0x48] sm:$0xff]
  %v326 = vld [vmem:[%s3 + $0x50] sm:$0xff]
  %v327 = vld [vmem:[%s3 + $0x58] sm:$0xff]
  %v328 = vld [vmem:[%s3 + $0x60] sm:$0xff]
  %v329 = vld [vmem:[%s3 + $0x68] sm:$0xff]
  %v330 = vld [vmem:[%s3 + $0x70] sm:$0xff]
  %v331 = vld [vmem:[%s3 + $0x78] sm:$0xff]
  %v340 = vrot.slane %v309, 7
  %v341 = vrot.slane %v310, 6
  %v342 = vrot.slane %v311, 5
  %v343 = vrot.slane %v312, 4
  %v344 = vrot.slane %v313, 3
  %v345 = vrot.slane %v314, 2
  %v346 = vrot.slane %v315, 1
  %vm347 = vcmask 1040384
  %v348 = vsel %vm347, %v308, %v340
  %vm349 = vcmask 1042434
  %v350 = vsel %vm349, %v341, %v342
  %vm351 = vcmask 1041408
  %v352 = vsel %vm351, %v348, %v350
  %vm353 = vcmask 1044484
  %v354 = vsel %vm353, %v343, %v344
  %vm355 = vcmask 1046534
  %v356 = vsel %vm355, %v345, %v346
  %vm357 = vcmask 1045508
  %v358 = vsel %vm357, %v354, %v356
  %vm359 = vcmask 1043456
  %v360 = vsel %vm359, %v352, %v358
  %vm361 = vcmask 1041409
  %v362 = vsel %vm361, %v308, %v340
  %vm363 = vcmask 1043459
  %v364 = vsel %vm363, %v341, %v342
  %vm365 = vcmask 1042433
  %v366 = vsel %vm365, %v362, %v364
  %vm367 = vcmask 1045509
  %v368 = vsel %vm367, %v343, %v344
  %vm369 = vcmask 1046528
  %v370 = vsel %vm369, %v346, %v345
  %vm371 = vcmask 1046533
  %v372 = vsel %vm371, %v368, %v370
  %vm373 = vcmask 1044481
  %v374 = vsel %vm373, %v366, %v372
  %v375 = vrot.slane %v374, 1
  %v376 = vsel %vm349, %v308, %v340
  %v377 = vsel %vm353, %v341, %v342
  %vm378 = vcmask 1043458
  %v379 = vsel %vm378, %v376, %v377
  %v380 = vsel %vm355, %v343, %v344
  %v381 = vsel %vm347, %v345, %v346
  %vm382 = vcmask 1045504
  %v383 = vsel %vm382, %v381, %v380
  %vm384 = vcmask 1045506
  %v385 = vsel %vm384, %v379, %v383
  %v386 = vrot.slane %v385, 2
  %v387 = vsel %vm363, %v308, %v340
  %v388 = vsel %vm367, %v341, %v342
  %vm389 = vcmask 1044483
  %v390 = vsel %vm389, %v387, %v388
  %v391 = vsel %vm369, %v344, %v343
  %v392 = vsel %vm361, %v345, %v346
  %vm393 = vcmask 1046529
  %v394 = vsel %vm393, %v392, %v391
  %vm395 = vcmask 1046531
  %v396 = vsel %vm395, %v390, %v394
  %v397 = vrot.slane %v396, 3
  %v398 = vsel %vm353, %v308, %v340
  %v399 = vsel %vm355, %v341, %v342
  %v400 = vsel %vm357, %v398, %v399
  %v401 = vsel %vm347, %v343, %v344
  %v402 = vsel %vm349, %v345, %v346
  %v403 = vsel %vm351, %v401, %v402
  %v404 = vsel %vm359, %v403, %v400
  %v405 = vrot.slane %v404, 4
  %v406 = vsel %vm367, %v308, %v340
  %v407 = vsel %vm369, %v342, %v341
  %v408 = vsel %vm371, %v406, %v407
  %v409 = vsel %vm361, %v343, %v344
  %v410 = vsel %vm363, %v345, %v346
  %v411 = vsel %vm365, %v409, %v410
  %v412 = vsel %vm373, %v411, %v408
  %v413 = vrot.slane %v412, 5
  %v414 = vsel %vm355, %v308, %v340
  %v415 = vsel %vm347, %v341, %v342
  %v416 = vsel %vm382, %v415, %v414
  %v417 = vsel %vm349, %v343, %v344
  %v418 = vsel %vm353, %v345, %v346
  %v419 = vsel %vm378, %v417, %v418
  %v420 = vsel %vm384, %v419, %v416
  %v421 = vrot.slane %v420, 6
  %v422 = vsel %vm369, %v340, %v308
  %v423 = vsel %vm361, %v341, %v342
  %v424 = vsel %vm393, %v423, %v422
  %v425 = vsel %vm363, %v343, %v344
  %v426 = vsel %vm367, %v345, %v346
  %v427 = vsel %vm389, %v425, %v426
  %v428 = vsel %vm395, %v427, %v424
  %v429 = vrot.slane %v428, 7
  %438 = vmatpush.msra.mxu0 %v331
  %439 = vmatpush.msra.mxu0 %v330
  %440 = vmatpush.msra.mxu0 %v329
  %441 = vmatpush.msra.mxu0 %v328
  %442 = vmatpush.msra.mxu0 %v327
  %443 = vmatpush.msra.mxu0 %v326
  %444 = vmatpush.msra.mxu0 %v325
  %445 = vmatpush.msra.mxu0 %v324
  %446 = vmatpush.msra.mxu0 %v323
  %447 = vmatpush.msra.mxu0 %v322
  %448 = vmatpush.msra.mxu0 %v321
  %449 = vmatpush.msra.mxu0 %v320
  %450 = vmatpush.msra.mxu0 %v319
  %451 = vmatpush.msra.mxu0 %v318
  %452 = vmatpush.msra.mxu0 %v317
  %453 = vmatpush.msra.mxu0 %v316
  %454 = vmatmul.f32.gmra.mxu0 %v360
  %v455 = vpop.f32.mrf.mxu0
  %v456 = vadd.f32 0.0, %v455
  %457 = vmatmul.f32.gmra.mxu0 %v375
  %v458 = vpop.f32.mrf.mxu0
  %v459 = vadd.f32 0.0, %v458
  %460 = vmatmul.f32.gmra.mxu0 %v386
  %v461 = vpop.f32.mrf.mxu0
  %v462 = vadd.f32 0.0, %v461
  %463 = vmatmul.f32.gmra.mxu0 %v397
  %v464 = vpop.f32.mrf.mxu0
  %v465 = vadd.f32 0.0, %v464
  %466 = vmatmul.f32.gmra.mxu0 %v405
  %v467 = vpop.f32.mrf.mxu0
  %v468 = vadd.f32 0.0, %v467
  %469 = vmatmul.f32.gmra.mxu0 %v413
  %v470 = vpop.f32.mrf.mxu0
  %v471 = vadd.f32 0.0, %v470
  %472 = vmatmul.f32.gmra.mxu0 %v421
  %v473 = vpop.f32.mrf.mxu0
  %v474 = vadd.f32 0.0, %v473
  %475 = vmatmul.f32.gmra.mxu0 %v429
  %v476 = vpop.f32.mrf.mxu0
  %v477 = vadd.f32 0.0, %v476
  %478 = vdwg.mxu0
  %s479 = scalar_lea.vmem %s1, 8
  %v480 = vld [vmem:[%s479] sm:$0xff]
  %v482 = vrot.slane %v480, 6
  %491 = vst [vmem:[#allocation1] ss:$9 sm:$0xff] %v456
  %s492 = scalar_lea.vmem [#allocation1], 1
  %493 = vst [vmem:[%s492] ss:$9 sm:$0xff] %v459
  %s494 = scalar_lea.vmem [#allocation1], 2
  %495 = vst [vmem:[%s494] ss:$9 sm:$0xff] %v462
  %s496 = scalar_lea.vmem [#allocation1], 3
  %497 = vst [vmem:[%s496] ss:$9 sm:$0xff] %v465
  %s498 = scalar_lea.vmem [#allocation1], 4
  %499 = vst [vmem:[%s498] ss:$9 sm:$0xff] %v468
  %s500 = scalar_lea.vmem [#allocation1], 5
  %501 = vst [vmem:[%s500] ss:$9 sm:$0xff] %v471
  %s502 = scalar_lea.vmem [#allocation1], 6
  %503 = vst [vmem:[%s502] ss:$9 sm:$0xff] %v474
  %s504 = scalar_lea.vmem [#allocation1], 7
  %505 = vst [vmem:[%s504] ss:$9 sm:$0xff] %v477
  %v506 = vld [vmem:[#allocation1] sm:$0xff]
  %v507 = vld [vmem:[#allocation1 + $0x9] sm:$0xff]
  %v508 = vld [vmem:[#allocation1 + $0x12] sm:$0xff]
  %v509 = vld [vmem:[#allocation1 + $0x1b] sm:$0xff]
  %v510 = vld [vmem:[#allocation1 + $0x24] sm:$0xff]
  %v511 = vld [vmem:[#allocation1 + $0x2d] sm:$0xff]
  %v512 = vld [vmem:[#allocation1 + $0x36] sm:$0xff]
  %v513 = vld [vmem:[#allocation1 + $0x3f] sm:$0xff]
  %v522 = vsel %vm128, %v482, 0
  %524 = vmatpush.msra.mxu0 0.0
  %525 = vmatpush.msra.mxu0 0.0
  %526 = vmatpush.msra.mxu0 0.0
  %527 = vmatpush.msra.mxu0 0.0
  %528 = vmatpush.msra.mxu0 0.0
  %529 = vmatpush.msra.mxu0 0.0
  %530 = vmatpush.msra.mxu0 0.0
  %531 = vmatpush.msra.mxu0 0.0
  %532 = vmatpush.msra.mxu0 0.0
  %533 = vmatpush.msra.mxu0 0.0
  %534 = vmatpush.msra.mxu0 0.0
  %535 = vmatpush.msra.mxu0 0.0
  %536 = vmatpush.msra.mxu0 0.0
  %537 = vmatpush.msra.mxu0 0.0
  %538 = vmatpush.msra.mxu0 0.0
  %539 = vmatpush.msra.mxu0 %v506
  %540 = vmatmul.f32.gmra.mxu0 %v522
  %v541 = vpop.f32.mrf.mxu0
  %v542 = vadd.f32 0.0, %v541
  %543 = vdwg.mxu0
  %544 = vmatpush.msra.mxu0 0.0
  %545 = vmatpush.msra.mxu0 0.0
  %546 = vmatpush.msra.mxu0 0.0
  %547 = vmatpush.msra.mxu0 0.0
  %548 = vmatpush.msra.mxu0 0.0
  %549 = vmatpush.msra.mxu0 0.0
  %550 = vmatpush.msra.mxu0 0.0
  %551 = vmatpush.msra.mxu0 0.0
  %552 = vmatpush.msra.mxu0 0.0
  %553 = vmatpush.msra.mxu0 0.0
  %554 = vmatpush.msra.mxu0 0.0
  %555 = vmatpush.msra.mxu0 0.0
  %556 = vmatpush.msra.mxu0 0.0
  %557 = vmatpush.msra.mxu0 0.0
  %558 = vmatpush.msra.mxu0 0.0
  %559 = vmatpush.msra.mxu0 %v507
  %560 = vmatmul.f32.gmra.mxu0 %v522
  %v561 = vpop.f32.mrf.mxu0
  %v562 = vadd.f32 0.0, %v561
  %563 = vdwg.mxu0
  %564 = vmatpush.msra.mxu0 0.0
  %565 = vmatpush.msra.mxu0 0.0
  %566 = vmatpush.msra.mxu0 0.0
  %567 = vmatpush.msra.mxu0 0.0
  %568 = vmatpush.msra.mxu0 0.0
  %569 = vmatpush.msra.mxu0 0.0
  %570 = vmatpush.msra.mxu0 0.0
  %571 = vmatpush.msra.mxu0 0.0
  %572 = vmatpush.msra.mxu0 0.0
  %573 = vmatpush.msra.mxu0 0.0
  %574 = vmatpush.msra.mxu0 0.0
  %575 = vmatpush.msra.mxu0 0.0
  %576 = vmatpush.msra.mxu0 0.0
  %577 = vmatpush.msra.mxu0 0.0
  %578 = vmatpush.msra.mxu0 0.0
  %579 = vmatpush.msra.mxu0 %v508
  %580 = vmatmul.f32.gmra.mxu0 %v522
  %v581 = vpop.f32.mrf.mxu0
  %v582 = vadd.f32 0.0, %v581
  %583 = vdwg.mxu0
  %584 = vmatpush.msra.mxu0 0.0
  %585 = vmatpush.msra.mxu0 0.0
  %586 = vmatpush.msra.mxu0 0.0
  %587 = vmatpush.msra.mxu0 0.0
  %588 = vmatpush.msra.mxu0 0.0
  %589 = vmatpush.msra.mxu0 0.0
  %590 = vmatpush.msra.mxu0 0.0
  %591 = vmatpush.msra.mxu0 0.0
  %592 = vmatpush.msra.mxu0 0.0
  %593 = vmatpush.msra.mxu0 0.0
  %594 = vmatpush.msra.mxu0 0.0
  %595 = vmatpush.msra.mxu0 0.0
  %596 = vmatpush.msra.mxu0 0.0
  %597 = vmatpush.msra.mxu0 0.0
  %598 = vmatpush.msra.mxu0 0.0
  %599 = vmatpush.msra.mxu0 %v509
  %600 = vmatmul.f32.gmra.mxu0 %v522
  %v601 = vpop.f32.mrf.mxu0
  %v602 = vadd.f32 0.0, %v601
  %603 = vdwg.mxu0
  %604 = vmatpush.msra.mxu0 0.0
  %605 = vmatpush.msra.mxu0 0.0
  %606 = vmatpush.msra.mxu0 0.0
  %607 = vmatpush.msra.mxu0 0.0
  %608 = vmatpush.msra.mxu0 0.0
  %609 = vmatpush.msra.mxu0 0.0
  %610 = vmatpush.msra.mxu0 0.0
  %611 = vmatpush.msra.mxu0 0.0
  %612 = vmatpush.msra.mxu0 0.0
  %613 = vmatpush.msra.mxu0 0.0
  %614 = vmatpush.msra.mxu0 0.0
  %615 = vmatpush.msra.mxu0 0.0
  %616 = vmatpush.msra.mxu0 0.0
  %617 = vmatpush.msra.mxu0 0.0
  %618 = vmatpush.msra.mxu0 0.0
  %619 = vmatpush.msra.mxu0 %v510
  %620 = vmatmul.f32.gmra.mxu0 %v522
  %v621 = vpop.f32.mrf.mxu0
  %v622 = vadd.f32 0.0, %v621
  %623 = vdwg.mxu0
  %624 = vmatpush.msra.mxu0 0.0
  %625 = vmatpush.msra.mxu0 0.0
  %626 = vmatpush.msra.mxu0 0.0
  %627 = vmatpush.msra.mxu0 0.0
  %628 = vmatpush.msra.mxu0 0.0
  %629 = vmatpush.msra.mxu0 0.0
  %630 = vmatpush.msra.mxu0 0.0
  %631 = vmatpush.msra.mxu0 0.0
  %632 = vmatpush.msra.mxu0 0.0
  %633 = vmatpush.msra.mxu0 0.0
  %634 = vmatpush.msra.mxu0 0.0
  %635 = vmatpush.msra.mxu0 0.0
  %636 = vmatpush.msra.mxu0 0.0
  %637 = vmatpush.msra.mxu0 0.0
  %638 = vmatpush.msra.mxu0 0.0
  %639 = vmatpush.msra.mxu0 %v511
  %640 = vmatmul.f32.gmra.mxu0 %v522
  %v641 = vpop.f32.mrf.mxu0
  %v642 = vadd.f32 0.0, %v641
  %643 = vdwg.mxu0
  %644 = vmatpush.msra.mxu0 0.0
  %645 = vmatpush.msra.mxu0 0.0
  %646 = vmatpush.msra.mxu0 0.0
  %647 = vmatpush.msra.mxu0 0.0
  %648 = vmatpush.msra.mxu0 0.0
  %649 = vmatpush.msra.mxu0 0.0
  %650 = vmatpush.msra.mxu0 0.0
  %651 = vmatpush.msra.mxu0 0.0
  %652 = vmatpush.msra.mxu0 0.0
  %653 = vmatpush.msra.mxu0 0.0
  %654 = vmatpush.msra.mxu0 0.0
  %655 = vmatpush.msra.mxu0 0.0
  %656 = vmatpush.msra.mxu0 0.0
  %657 = vmatpush.msra.mxu0 0.0
  %658 = vmatpush.msra.mxu0 0.0
  %659 = vmatpush.msra.mxu0 %v512
  %660 = vmatmul.f32.gmra.mxu0 %v522
  %v661 = vpop.f32.mrf.mxu0
  %v662 = vadd.f32 0.0, %v661
  %663 = vdwg.mxu0
  %664 = vmatpush.msra.mxu0 0.0
  %665 = vmatpush.msra.mxu0 0.0
  %666 = vmatpush.msra.mxu0 0.0
  %667 = vmatpush.msra.mxu0 0.0
  %668 = vmatpush.msra.mxu0 0.0
  %669 = vmatpush.msra.mxu0 0.0
  %670 = vmatpush.msra.mxu0 0.0
  %671 = vmatpush.msra.mxu0 0.0
  %672 = vmatpush.msra.mxu0 0.0
  %673 = vmatpush.msra.mxu0 0.0
  %674 = vmatpush.msra.mxu0 0.0
  %675 = vmatpush.msra.mxu0 0.0
  %676 = vmatpush.msra.mxu0 0.0
  %677 = vmatpush.msra.mxu0 0.0
  %678 = vmatpush.msra.mxu0 0.0
  %679 = vmatpush.msra.mxu0 %v513
  %680 = vmatmul.f32.gmra.mxu0 %v522
  %v681 = vpop.f32.mrf.mxu0
  %v682 = vadd.f32 0.0, %v681
  %683 = vdwg.mxu0
  %vm684 = vcmp.ge.f32.partialorder %v542, 0.0
  %vm685 = vcmp.ge.f32.partialorder %v562, 0.0
  %vm686 = vcmp.ge.f32.partialorder %v582, 0.0
  %vm687 = vcmp.ge.f32.partialorder %v602, 0.0
  %vm688 = vcmp.ge.f32.partialorder %v622, 0.0
  %vm689 = vcmp.ge.f32.partialorder %v642, 0.0
  %vm690 = vcmp.ge.f32.partialorder %v662, 0.0
  %vm691 = vcmp.ge.f32.partialorder %v682, 0.0
  %v692 = vmul.f32 %v542, 0.2
  %v693 = vmul.f32 %v562, 0.2
  %v694 = vmul.f32 %v582, 0.2
  %v695 = vmul.f32 %v602, 0.2
  %v696 = vmul.f32 %v622, 0.2
  %v697 = vmul.f32 %v642, 0.2
  %v698 = vmul.f32 %v662, 0.2
  %v699 = vmul.f32 %v682, 0.2
  %v700 = vsel %vm684, %v542, %v692
  %v701 = vsel %vm685, %v562, %v693
  %v702 = vsel %vm686, %v582, %v694
  %v703 = vsel %vm687, %v602, %v695
  %v704 = vsel %vm688, %v622, %v696
  %v705 = vsel %vm689, %v642, %v697
  %v706 = vsel %vm690, %v662, %v698
  %v707 = vsel %vm691, %v682, %v699
  %v708 = vrot.slane %v702, 4
  %vm709 = vcmask 1047556
  %v710 = vsel %vm709, %v708, %v700
  %v712 = vunpack.c.l.s4 1983009808
  %v713 = vunpack.c.0.s8 %v712
  %v714 = vperm.slane %v710, %v713
  %v715 = vrot.slane %v703, 4
  %v716 = vsel %vm709, %v715, %v701
  %v718 = vunpack.c.l.s4 1983009808
  %v719 = vunpack.c.0.s8 %v718
  %v720 = vperm.slane %v716, %v719
  %v721 = vrot.slane %v706, 4
  %v722 = vsel %vm709, %v721, %v704
  %v724 = vunpack.c.l.s4 1983009808
  %v725 = vunpack.c.0.s8 %v724
  %v726 = vperm.slane %v722, %v725
  %v727 = vrot.slane %v707, 4
  %v728 = vsel %vm709, %v727, %v705
  %v730 = vunpack.c.l.s4 1983009808
  %v731 = vunpack.c.0.s8 %v730
  %v732 = vperm.slane %v728, %v731
  %v733 = vrot.slane %v720, 4
  %v734 = vsel %vm709, %v733, %v714
  %v736 = vunpack.c.l.s4 1934713408
  %v737 = vunpack.c.0.s8 %v736
  %v738 = vperm.slane %v734, %v737
  %v739 = vrot.slane %v732, 4
  %v740 = vsel %vm709, %v739, %v726
  %v742 = vunpack.c.l.s4 1934713408
  %v743 = vunpack.c.0.s8 %v742
  %v744 = vperm.slane %v740, %v743
  %v745 = vrot.slane %v744, 4
  %v746 = vsel %vm709, %v745, %v738
  %v747 = vrot.slane %v738, 4
  %v748 = vsel %vm709, %v744, %v747
  %v749 = vld [vmem:[%s4] sm:$0xff]
  %v750 = vld [vmem:[%s4 + $0x8] sm:$0xff]
  %v751 = vld [vmem:[%s4 + $0x10] sm:$0xff]
  %v752 = vld [vmem:[%s4 + $0x18] sm:$0xff]
  %v753 = vld [vmem:[%s4 + $0x20] sm:$0xff]
  %v754 = vld [vmem:[%s4 + $0x28] sm:$0xff]
  %v755 = vld [vmem:[%s4 + $0x30] sm:$0xff]
  %v756 = vld [vmem:[%s4 + $0x38] sm:$0xff]
  %v757 = vld [vmem:[%s4 + $0x40] sm:$0xff]
  %v758 = vld [vmem:[%s4 + $0x48] sm:$0xff]
  %v759 = vld [vmem:[%s4 + $0x50] sm:$0xff]
  %v760 = vld [vmem:[%s4 + $0x58] sm:$0xff]
  %v761 = vld [vmem:[%s4 + $0x60] sm:$0xff]
  %v762 = vld [vmem:[%s4 + $0x68] sm:$0xff]
  %v763 = vld [vmem:[%s4 + $0x70] sm:$0xff]
  %v764 = vld [vmem:[%s4 + $0x78] sm:$0xff]
  %v765 = vld [vmem:[%s5] sm:$0x1]
  %v767 = vperm.slane %v765, 0
  %769 = vmatpush.msra.mxu0 %v764
  %770 = vmatpush.msra.mxu0 %v763
  %771 = vmatpush.msra.mxu0 %v762
  %772 = vmatpush.msra.mxu0 %v761
  %773 = vmatpush.msra.mxu0 %v760
  %774 = vmatpush.msra.mxu0 %v759
  %775 = vmatpush.msra.mxu0 %v758
  %776 = vmatpush.msra.mxu0 %v757
  %777 = vmatpush.msra.mxu0 %v756
  %778 = vmatpush.msra.mxu0 %v755
  %779 = vmatpush.msra.mxu0 %v754
  %780 = vmatpush.msra.mxu0 %v753
  %781 = vmatpush.msra.mxu0 %v752
  %782 = vmatpush.msra.mxu0 %v751
  %783 = vmatpush.msra.mxu0 %v750
  %784 = vmatpush.msra.mxu0 %v749
  %785 = vmatmul.f32.gmra.mxu0 %v746
  %v786 = vpop.f32.mrf.mxu0
  %v787 = vadd.f32 %v767, %v786
  %788 = vdwg.mxu0
  %789 = vst [vmem:[%s6] sm:$0xff] %v787
  %s790 = scalar_lea.vmem %s4, 128
  %v791 = vld [vmem:[%s790] sm:$0xff]
  %v792 = vld [vmem:[%s790 + $0x8] sm:$0xff]
  %v793 = vld [vmem:[%s790 + $0x10] sm:$0xff]
  %v794 = vld [vmem:[%s790 + $0x18] sm:$0xff]
  %v795 = vld [vmem:[%s790 + $0x20] sm:$0xff]
  %v796 = vld [vmem:[%s790 + $0x28] sm:$0xff]
  %v797 = vld [vmem:[%s790 + $0x30] sm:$0xff]
  %v798 = vld [vmem:[%s790 + $0x38] sm:$0xff]
  %v799 = vld [vmem:[%s790 + $0x40] sm:$0xff]
  %v800 = vld [vmem:[%s790 + $0x48] sm:$0xff]
  %v801 = vld [vmem:[%s790 + $0x50] sm:$0xff]
  %v802 = vld [vmem:[%s790 + $0x58] sm:$0xff]
  %v803 = vld [vmem:[%s790 + $0x60] sm:$0xff]
  %v804 = vld [vmem:[%s790 + $0x68] sm:$0xff]
  %v805 = vld [vmem:[%s790 + $0x70] sm:$0xff]
  %v806 = vld [vmem:[%s790 + $0x78] sm:$0xff]
  %s807 = scalar_lea.vmem %s5, 1
  %v808 = vld [vmem:[%s807] sm:$0x1]
  %v810 = vperm.slane %v808, 0
  %812 = vmatpush.msra.mxu0 %v806
  %813 = vmatpush.msra.mxu0 %v805
  %814 = vmatpush.msra.mxu0 %v804
  %815 = vmatpush.msra.mxu0 %v803
  %816 = vmatpush.msra.mxu0 %v802
  %817 = vmatpush.msra.mxu0 %v801
  %818 = vmatpush.msra.mxu0 %v800
  %819 = vmatpush.msra.mxu0 %v799
  %820 = vmatpush.msra.mxu0 %v798
  %821 = vmatpush.msra.mxu0 %v797
  %822 = vmatpush.msra.mxu0 %v796
  %823 = vmatpush.msra.mxu0 %v795
  %824 = vmatpush.msra.mxu0 %v794
  %825 = vmatpush.msra.mxu0 %v793
  %826 = vmatpush.msra.mxu0 %v792
  %827 = vmatpush.msra.mxu0 %v791
  %828 = vmatmul.f32.gmra.mxu0 %v748
  %v829 = vpop.f32.mrf.mxu0
  %v830 = vadd.f32 %v810, %v829
  %831 = vdwg.mxu0
  %s832 = scalar_lea.vmem %s6, 8
  %833 = vst [vmem:[%s832] sm:$0xff] %v830
  // Predicated region
  $region26: #{graph_wavelet_rsr_forward.1} parent=0 // pred_check
    _
  $region27: #{graph_wavelet_rsr_forward.1} parent=0 // pred_check_branch
    %835 = sbr.rel (0) target = $region29
  $region28: #{graph_wavelet_rsr_forward.1} parent=0 // pred_region
    _
  $region29: #{graph_wavelet_rsr_forward.1} parent=0 // pred_fallthru
    _
  // Predicated region
  $region30: #{graph_wavelet_rsr_forward.1} parent=0 // pred_check
    _
  $region31: #{graph_wavelet_rsr_forward.1} parent=0 // pred_check_branch
    %837 = sbr.rel (0) target = $region33
  $region32: #{graph_wavelet_rsr_forward.1} parent=0 // pred_region
    _
  $region33: #{graph_wavelet_rsr_forward.1} parent=0 // pred_fallthru
    _

</llo_original>
